<compile_context>
chip_gen: v6e
topology: v6e:2x2x1
jax: 0.10.0
libtpu: 0.0.40
codegen_flags: <defaults>
</compile_context>

<pallas_src>
import numpy as np
import jax
import jax.numpy as jnp
from jax.experimental import pallas as pl
from jax.experimental.pallas import tpu as pltpu


def _round_up(a, m):
    return ((a + m - 1) // m) * m


def _mlp_kernel(xT_ref, pcols_ref, w23_ref, o_ref):
    # Column layout: features on sublanes, batch on lanes.
    x0 = xT_ref[0:1, :]                       # (1, TN)
    x1 = xT_ref[1:2, :]                       # (1, TN)

    w1c0 = pcols_ref[0]                       # (H, 1)  first column of W1
    w1c1 = pcols_ref[1]                       # (H, 1)  second column of W1
    w4c = pcols_ref[2]                        # (H, 1)  W4^T
    b1 = pcols_ref[3]                         # (H, 1)
    b2 = pcols_ref[4]
    b3 = pcols_ref[5]
    b4 = pcols_ref[6, 0:1, :]                 # (1, 1)

    # Layer 1: K=2 contraction as two VPU broadcast-FMAs (a (2,TN) matmul would
    # pad K to 128 on the MXU for <1% utilisation and add MXU latency).
    y1 = jnp.tanh(w1c0 * x0 + w1c1 * x1 + b1)                     # (H, TN)

    # Layers 2/3: (H,H) @ (H,TN) on the MXU, f32 accumulation.
    y2 = jnp.tanh(jnp.dot(w23_ref[0], y1,
                          preferred_element_type=jnp.float32) + b2)
    y3 = jnp.tanh(jnp.dot(w23_ref[1], y2,
                          preferred_element_type=jnp.float32) + b3)

    # Layer 4 (D_out=1): VPU multiply + sublane reduce -> lane-dense (1, TN).
    o_ref[...] = jnp.sum(w4c * y3, axis=0, keepdims=True) + b4


def prepare_params(params, scale):
    """One-time param prep: fold scale (== 1.0 exactly) into weights/biases and
    pack them into two kernel-ready arrays:
      pcols: (7, H, 1) = [W1[:,0], W1[:,1], W4^T, b1, b2, b3, b4*ones]
      w23  : (2, H, H) = [W2, W3] in PyTorch (out, in) layout (used as W @ x^T)
    """
    s = jnp.float32(scale)
    w1 = s * params["w1"].astype(jnp.float32)    # (H, 2)
    w2 = s * params["w2"].astype(jnp.float32)    # (H, H)
    w3 = s * params["w3"].astype(jnp.float32)    # (H, H)
    w4 = s * params["w4"].astype(jnp.float32)    # (1, H)
    b1 = s * params["b1"].astype(jnp.float32)
    b2 = s * params["b2"].astype(jnp.float32)
    b3 = s * params["b3"].astype(jnp.float32)
    b4 = s * params["b4"].astype(jnp.float32)    # (1,)

    h = w2.shape[0]
    pcols = jnp.stack([w1[:, 0], w1[:, 1], w4[0, :],
                       b1, b2, b3,
                       jnp.full((h,), b4[0], dtype=jnp.float32)])   # (7, H)
    return {"pcols": pcols.reshape(7, h, 1),
            "w23": jnp.stack([w2, w3])}


def particular_forward(x, prepped, *, tn=4096):
    """x: (N, 2) float32 -> (N, 1) float32."""
    N, d_in = x.shape
    assert d_in == 2, "kernel is specialised for D_in == 2 (x, y) coordinates"
    h = prepped["w23"].shape[1]

    # Lane-dense tile over the batch: multiple of 128, capped for tiny batches.
    tn = _round_up(min(tn, _round_up(N, 128)), 128)
    n_pad = _round_up(N, tn)

    # Layout plumbing (not compute): present the batch on the lane axis.
    xT = x.astype(jnp.float32).T                       # (2, N)
    if n_pad != N:
        xT = jnp.pad(xT, ((0, 0), (0, n_pad - N)))

    grid = (n_pad // tn,)

    out = pl.pallas_call(
        _mlp_kernel,
        out_shape=jax.ShapeDtypeStruct((1, n_pad), jnp.float32),
        grid_spec=pltpu.PrefetchScalarGridSpec(
            num_scalar_prefetch=0,
            grid=grid,
            in_specs=[
                pl.BlockSpec((2, tn), lambda i: (0, i)),          # x^T tile
                pl.BlockSpec((7, h, 1), lambda i: (0, 0, 0)),     # packed cols (resident)
                pl.BlockSpec((2, h, h), lambda i: (0, 0, 0)),     # W2/W3 (resident)
            ],
            out_specs=pl.BlockSpec((1, tn), lambda i: (0, i)),    # lane-dense out
        ),
        compiler_params=pltpu.CompilerParams(
            dimension_semantics=("parallel",),   # shard tiles across TCs (v7x)
        ),
    )(xT, prepped["pcols"], prepped["w23"])

    return out[0, :N].reshape(N, 1)


def init_params(key, D_in, H, D_out):
    """Deterministic init matching the PyTorch module's __init__ distributions."""
    ks = jax.random.split(key, 8)
    params = {
        "w1": jax.random.normal(ks[0], (H, D_in)) * np.sqrt(2.0 / (D_in + H)),
        "w2": jax.random.normal(ks[1], (H, H)) * np.sqrt(2.0 / (H + H)),
        "w3": jax.random.normal(ks[2], (H, H)) * np.sqrt(2.0 / (H + H)),
        "w4": jax.random.normal(ks[3], (D_out, H)) * np.sqrt(2.0 / (H + D_out)),
        "b1": jax.random.normal(ks[4], (H,)),
        "b2": jax.random.normal(ks[5], (H,)),
        "b3": jax.random.normal(ks[6], (H,)),
        "b4": jax.random.normal(ks[7], (D_out,)),
    }
    return {k: v.astype(jnp.float32) for k, v in params.items()}


def reference_forward(x, params, scale):
    hp = jax.lax.Precision.HIGHEST
    y1 = jnp.tanh(scale * (jnp.dot(x, params["w1"].T, precision=hp) + params["b1"]))
    y2 = jnp.tanh(scale * (jnp.dot(y1, params["w2"].T, precision=hp) + params["b2"]))
    y3 = jnp.tanh(scale * (jnp.dot(y2, params["w3"].T, precision=hp) + params["b3"]))
    return scale * (jnp.dot(y3, params["w4"].T, precision=hp) + params["b4"])


if __name__ == "__main__":
    # Forward consumes batches of (x, y) coordinate pairs -> D_in = 2.
    D_in, H, D_out = 2, 32, 1
    N = 100  # small batch of collocation points

    key = jax.random.PRNGKey(0)
    k_params, k_x = jax.random.split(key)
    params = init_params(k_params, D_in, H, D_out)

    # a1 = 0.1, n = 1 / a1 -> scale = n * a1 (== 1.0 exactly in f32)
    a1 = jnp.float32(0.1)
    scale = (1.0 / a1) * a1

    x = jax.random.uniform(k_x, (N, D_in), dtype=jnp.float32,
                           minval=-1.0, maxval=1.0)

    prepped = prepare_params(params, scale)
    out = particular_forward(x, prepped)
    out = jax.block_until_ready(out)

    ref = reference_forward(x, params, scale)
    assert out.shape == (N, D_out)
    np.testing.assert_allclose(np.asarray(out), np.asarray(ref),
                               rtol=1e-5, atol=1e-5)

    print("KERNEL_OK")
</pallas_src>

<mosaic_0001>
module attributes {stable_mosaic.version = 11 : i64} {
  func.func @_mlp_kernel(%arg0: i32, %arg1: memref<2x128xf32, #tpu.memory_space<vmem>>, %arg2: memref<7x32x1xf32, #tpu.memory_space<vmem>>, %arg3: memref<2x32x32xf32, #tpu.memory_space<vmem>>, %arg4: memref<1x128xf32, #tpu.memory_space<vmem>>) attributes {dimension_semantics = [#tpu.dimension_semantics<parallel>], iteration_bounds = array<i64: 1>, scalar_prefetch = 0 : i64, scratch_operands = 0 : i64, tpu.core_type = #tpu.core_type<tc>, window_params = [{transform_indices = @transform_0, window_bounds = array<i64: 2, 128>}, {pipeline_mode = #tpu.pipeline_mode<synchronous>, transform_indices = @transform_1, window_bounds = array<i64: 7, 32, 1>}, {pipeline_mode = #tpu.pipeline_mode<synchronous>, transform_indices = @transform_2, window_bounds = array<i64: 2, 32, 32>}, {transform_indices = @transform_3, window_bounds = array<i64: 1, 128>}]} {
    %c0 = arith.constant 0 : index
    %c0_0 = arith.constant 0 : index
    %0 = vector.load %arg1[%c0, %c0_0] : memref<2x128xf32, #tpu.memory_space<vmem>>, vector<1x128xf32>
    %c1 = arith.constant 1 : index
    %c0_1 = arith.constant 0 : index
    %1 = vector.load %arg1[%c1, %c0_1] : memref<2x128xf32, #tpu.memory_space<vmem>>, vector<1x128xf32>
    %c0_2 = arith.constant 0 : index
    %c0_3 = arith.constant 0 : index
    %c0_4 = arith.constant 0 : index
    %2 = vector.load %arg2[%c0_2, %c0_3, %c0_4] : memref<7x32x1xf32, #tpu.memory_space<vmem>>, vector<1x32x1xf32>
    %3 = vector.shape_cast %2 : vector<1x32x1xf32> to vector<32x1xf32>
    %c1_5 = arith.constant 1 : index
    %c0_6 = arith.constant 0 : index
    %c0_7 = arith.constant 0 : index
    %4 = vector.load %arg2[%c1_5, %c0_6, %c0_7] : memref<7x32x1xf32, #tpu.memory_space<vmem>>, vector<1x32x1xf32>
    %5 = vector.shape_cast %4 : vector<1x32x1xf32> to vector<32x1xf32>
    %c2 = arith.constant 2 : index
    %c0_8 = arith.constant 0 : index
    %c0_9 = arith.constant 0 : index
    %6 = vector.load %arg2[%c2, %c0_8, %c0_9] : memref<7x32x1xf32, #tpu.memory_space<vmem>>, vector<1x32x1xf32>
    %7 = vector.shape_cast %6 : vector<1x32x1xf32> to vector<32x1xf32>
    %c3 = arith.constant 3 : index
    %c0_10 = arith.constant 0 : index
    %c0_11 = arith.constant 0 : index
    %8 = vector.load %arg2[%c3, %c0_10, %c0_11] : memref<7x32x1xf32, #tpu.memory_space<vmem>>, vector<1x32x1xf32>
    %9 = vector.shape_cast %8 : vector<1x32x1xf32> to vector<32x1xf32>
    %c4 = arith.constant 4 : index
    %c0_12 = arith.constant 0 : index
    %c0_13 = arith.constant 0 : index
    %10 = vector.load %arg2[%c4, %c0_12, %c0_13] : memref<7x32x1xf32, #tpu.memory_space<vmem>>, vector<1x32x1xf32>
    %11 = vector.shape_cast %10 : vector<1x32x1xf32> to vector<32x1xf32>
    %c5 = arith.constant 5 : index
    %c0_14 = arith.constant 0 : index
    %c0_15 = arith.constant 0 : index
    %12 = vector.load %arg2[%c5, %c0_14, %c0_15] : memref<7x32x1xf32, #tpu.memory_space<vmem>>, vector<1x32x1xf32>
    %13 = vector.shape_cast %12 : vector<1x32x1xf32> to vector<32x1xf32>
    %c6 = arith.constant 6 : index
    %c0_16 = arith.constant 0 : index
    %c0_17 = arith.constant 0 : index
    %14 = vector.load %arg2[%c6, %c0_16, %c0_17] : memref<7x32x1xf32, #tpu.memory_space<vmem>>, vector<1x1x1xf32>
    %15 = vector.shape_cast %14 : vector<1x1x1xf32> to vector<1x1xf32>
    %16 = vector.broadcast %3 : vector<32x1xf32> to vector<32x128xf32>
    %17 = vector.broadcast %0 : vector<1x128xf32> to vector<32x128xf32>
    %18 = arith.mulf %16, %17 : vector<32x128xf32>
    %19 = vector.broadcast %5 : vector<32x1xf32> to vector<32x128xf32>
    %20 = vector.broadcast %1 : vector<1x128xf32> to vector<32x128xf32>
    %21 = arith.mulf %19, %20 : vector<32x128xf32>
    %22 = arith.addf %18, %21 : vector<32x128xf32>
    %23 = vector.broadcast %9 : vector<32x1xf32> to vector<32x128xf32>
    %24 = arith.addf %22, %23 : vector<32x128xf32>
    %25 = math.tanh %24 : vector<32x128xf32>
    %c0_18 = arith.constant 0 : index
    %c0_19 = arith.constant 0 : index
    %c0_20 = arith.constant 0 : index
    %26 = vector.load %arg3[%c0_18, %c0_19, %c0_20] : memref<2x32x32xf32, #tpu.memory_space<vmem>>, vector<1x32x32xf32>
    %27 = vector.shape_cast %26 : vector<1x32x32xf32> to vector<32x32xf32>
    %cst = arith.constant dense<0.000000e+00> : vector<32x128xf32>
    %28 = tpu.matmul %27, %25, %cst {dimension_numbers = #tpu.dot_dimension_numbers<[1], [0], [0], [1], [0, 0, 1, 1], [], []>} : vector<32x32xf32>, vector<32x128xf32>, vector<32x128xf32> -> vector<32x128xf32>
    %29 = vector.broadcast %11 : vector<32x1xf32> to vector<32x128xf32>
    %30 = arith.addf %28, %29 : vector<32x128xf32>
    %31 = math.tanh %30 : vector<32x128xf32>
    %c1_21 = arith.constant 1 : index
    %c0_22 = arith.constant 0 : index
    %c0_23 = arith.constant 0 : index
    %32 = vector.load %arg3[%c1_21, %c0_22, %c0_23] : memref<2x32x32xf32, #tpu.memory_space<vmem>>, vector<1x32x32xf32>
    %33 = vector.shape_cast %32 : vector<1x32x32xf32> to vector<32x32xf32>
    %cst_24 = arith.constant dense<0.000000e+00> : vector<32x128xf32>
    %34 = tpu.matmul %33, %31, %cst_24 {dimension_numbers = #tpu.dot_dimension_numbers<[1], [0], [0], [1], [0, 0, 1, 1], [], []>} : vector<32x32xf32>, vector<32x128xf32>, vector<32x128xf32> -> vector<32x128xf32>
    %35 = vector.broadcast %13 : vector<32x1xf32> to vector<32x128xf32>
    %36 = arith.addf %34, %35 : vector<32x128xf32>
    %37 = math.tanh %36 : vector<32x128xf32>
    %38 = vector.broadcast %7 : vector<32x1xf32> to vector<32x128xf32>
    %39 = arith.mulf %38, %37 : vector<32x128xf32>
    %cst_25 = arith.constant dense<0.000000e+00> : vector<128xf32>
    %40 = vector.multi_reduction <add>, %39, %cst_25 [0] : vector<32x128xf32> to vector<128xf32>
    %41 = vector.shape_cast %40 : vector<128xf32> to vector<1x128xf32>
    %42 = vector.broadcast %15 : vector<1x1xf32> to vector<1x128xf32>
    %43 = arith.addf %41, %42 : vector<1x128xf32>
    %c0_26 = arith.constant 0 : index
    %c0_27 = arith.constant 0 : index
    %44 = vector.load %arg4[%c0_26, %c0_27] : memref<1x128xf32, #tpu.memory_space<vmem>>, vector<1x128xf32>
    tpu.vector_store %arg4[%c0_26, %c0_27], %43 {strides = array<i32>} : memref<1x128xf32, #tpu.memory_space<vmem>>, vector<1x128xf32>,
    return
  }
  func.func @transform_0(%arg0: i32) -> (i32, i32) {
    %c0_i32 = arith.constant 0 : i32
    %c0_i32_0 = arith.constant 0 : i32
    return %c0_i32, %arg0 : i32, i32
  }
  func.func @transform_1(%arg0: i32) -> (i32, i32, i32) {
    %c0_i32 = arith.constant 0 : i32
    %c0_i32_0 = arith.constant 0 : i32
    %c0_i32_1 = arith.constant 0 : i32
    %c0_i32_2 = arith.constant 0 : i32
    return %c0_i32, %c0_i32_0, %c0_i32_1 : i32, i32, i32
  }
  func.func @transform_2(%arg0: i32) -> (i32, i32, i32) {
    %c0_i32 = arith.constant 0 : i32
    %c0_i32_0 = arith.constant 0 : i32
    %c0_i32_1 = arith.constant 0 : i32
    %c0_i32_2 = arith.constant 0 : i32
    return %c0_i32, %c0_i32_0, %c0_i32_1 : i32, i32, i32
  }
  func.func @transform_3(%arg0: i32) -> (i32, i32) {
    %c0_i32 = arith.constant 0 : i32
    %c0_i32_0 = arith.constant 0 : i32
    return %c0_i32, %arg0 : i32, i32
  }
}

</mosaic_0001>

<llo_original>
// kernel: tpu_custom_call.1
$region0: #{tpu_custom_call.1}
  #allocation0 [shape = 'u32[]', space=smem, size = 0x4, offset = 0x4, fixed_abs, tag = 'smem constant byte address 0x4 - core index']
  #allocation1 [shape = 'u32[144,128]{1,0:T(1,128)}', space=vmem, size = 0x12000, scoped, tag = 'internal scratch']
  %s0 = inlined_call_operand.vmem [shape: f32[2,128], index: 0, kind: input, shape index: {}]
  %s1 = inlined_call_operand.vmem [shape: f32[7,32,1], index: 1, kind: input, shape index: {}]
  %s2 = inlined_call_operand.vmem [shape: f32[2,32,32], index: 2, kind: input, shape index: {}]
  %s3 = inlined_call_operand.hbm [shape: f32[1,128], index: 3, kind: output, shape index: {}]
  %s4 = sld [smem:[#allocation0]]
  $region22: #{tpu_custom_call.1} parent=0
    _
  %s6 = ssub.s32 1, %s4
  %s7 = scalar_select 0, %s6, %s4
  $region1: #{tpu_custom_call.1} parent=0
    #allocation2 [shape = 'u8[512]{0}', space=vmem, size = 0x400, scoped, tag = 'output window, operand 0, single buffered']
    #allocation3 [shape = 's32[1]{0}', space=sflag, size = 0x4, scoped, tag = 'scoped memory for tpu_custom_call.1']
    %8 = vsyncpa [#allocation3], 0
    // Predicated region
    $region2: #{tpu_custom_call.1} parent=1 // pred_check
      _
    $region3: #{tpu_custom_call.1} parent=1 // pred_check_branch
      %10 = sbr.rel (0) target = $region5
    $region4: #{tpu_custom_call.1} parent=1 // pred_region
      _
    $region5: #{tpu_custom_call.1} parent=1 // pred_fallthru
      _
    // Predicated region
    $region6: #{tpu_custom_call.1} parent=1 // pred_check
      _
    $region7: #{tpu_custom_call.1} parent=1 // pred_check_branch
      %12 = sbr.rel (0) target = $region9
    $region8: #{tpu_custom_call.1} parent=1 // pred_region
      _
    $region9: #{tpu_custom_call.1} parent=1 // pred_fallthru
      _
    // Predicated region
    $region10: #{tpu_custom_call.1} parent=1 // pred_check
      _
    $region11: #{tpu_custom_call.1} parent=1 // pred_check_branch
      %14 = sbr.rel (0) target = $region13
    $region12: #{tpu_custom_call.1} parent=1 // pred_region
      _
    $region13: #{tpu_custom_call.1} parent=1 // pred_fallthru
      _
    %v15 = vld [vmem:[%s0] sm:$0x1]
    %v16 = vld [vmem:[%s0 + $0x1] sm:$0x1]
    %v17 = vld [vmem:[%s1] sm:$0xff]
    %v18 = vld [vmem:[%s1 + $0x8] sm:$0xff]
    %v19 = vld [vmem:[%s1 + $0x10] sm:$0xff]
    %v20 = vld [vmem:[%s1 + $0x18] sm:$0xff]
    %s21 = scalar_lea.vmem %s1, 32
    %v22 = vld [vmem:[%s21] sm:$0xff]
    %v23 = vld [vmem:[%s21 + $0x8] sm:$0xff]
    %v24 = vld [vmem:[%s21 + $0x10] sm:$0xff]
    %v25 = vld [vmem:[%s21 + $0x18] sm:$0xff]
    %s26 = scalar_lea.vmem %s1, 64
    %v27 = vld [vmem:[%s26] sm:$0xff]
    %v28 = vld [vmem:[%s26 + $0x8] sm:$0xff]
    %v29 = vld [vmem:[%s26 + $0x10] sm:$0xff]
    %v30 = vld [vmem:[%s26 + $0x18] sm:$0xff]
    %s31 = scalar_lea.vmem %s1, 96
    %v32 = vld [vmem:[%s31] sm:$0xff]
    %v33 = vld [vmem:[%s31 + $0x8] sm:$0xff]
    %v34 = vld [vmem:[%s31 + $0x10] sm:$0xff]
    %v35 = vld [vmem:[%s31 + $0x18] sm:$0xff]
    %s36 = scalar_lea.vmem %s1, 128
    %v37 = vld [vmem:[%s36] sm:$0xff]
    %v38 = vld [vmem:[%s36 + $0x8] sm:$0xff]
    %v39 = vld [vmem:[%s36 + $0x10] sm:$0xff]
    %v40 = vld [vmem:[%s36 + $0x18] sm:$0xff]
    %s41 = scalar_lea.vmem %s1, 160
    %v42 = vld [vmem:[%s41] sm:$0xff]
    %v43 = vld [vmem:[%s41 + $0x8] sm:$0xff]
    %v44 = vld [vmem:[%s41 + $0x10] sm:$0xff]
    %v45 = vld [vmem:[%s41 + $0x18] sm:$0xff]
    %s46 = scalar_lea.vmem %s1, 192
    %v47 = vld [vmem:[%s46] sm:$0x1]
    %49 = vset.pattern.permute.xlu0 0
    %50 = vperm.xlu0 %49, %v17
    %v51 = vpop.permute.xlu0 %50
    %54 = vset.pattern.permute.xlu0 0
    %55 = vperm.xlu0 %54, %v18
    %v56 = vpop.permute.xlu0 %55
    %59 = vset.pattern.permute.xlu0 0
    %60 = vperm.xlu0 %59, %v19
    %v61 = vpop.permute.xlu0 %60
    %64 = vset.pattern.permute.xlu0 0
    %65 = vperm.xlu0 %64, %v20
    %v66 = vpop.permute.xlu0 %65
    %v68 = vlaneseq
    %v69 = vshrl.u32 %v68, 7
    %v70 = vsub.s32 0, %v69
    %v71 = vrot.slane %v15, %v70
    %v72 = vmul.f32 %v51, %v71
    %v73 = vmul.f32 %v56, %v71
    %v74 = vmul.f32 %v61, %v71
    %v75 = vmul.f32 %v66, %v71
    %77 = vset.pattern.permute.xlu0 0
    %78 = vperm.xlu0 %77, %v22
    %v79 = vpop.permute.xlu0 %78
    %82 = vset.pattern.permute.xlu0 0
    %83 = vperm.xlu0 %82, %v23
    %v84 = vpop.permute.xlu0 %83
    %87 = vset.pattern.permute.xlu0 0
    %88 = vperm.xlu0 %87, %v24
    %v89 = vpop.permute.xlu0 %88
    %92 = vset.pattern.permute.xlu0 0
    %93 = vperm.xlu0 %92, %v25
    %v94 = vpop.permute.xlu0 %93
    %v96 = vlaneseq
    %v97 = vshrl.u32 %v96, 7
    %v98 = vsub.s32 0, %v97
    %v99 = vrot.slane %v16, %v98
    %v100 = vmul.f32 %v79, %v99
    %v101 = vmul.f32 %v84, %v99
    %v102 = vmul.f32 %v89, %v99
    %v103 = vmul.f32 %v94, %v99
    %v104 = vadd.f32 %v72, %v100
    %v105 = vadd.f32 %v73, %v101
    %v106 = vadd.f32 %v74, %v102
    %v107 = vadd.f32 %v75, %v103
    %109 = vset.pattern.permute.xlu0 0
    %110 = vperm.xlu0 %109, %v32
    %v111 = vpop.permute.xlu0 %110
    %114 = vset.pattern.permute.xlu0 0
    %115 = vperm.xlu0 %114, %v33
    %v116 = vpop.permute.xlu0 %115
    %119 = vset.pattern.permute.xlu0 0
    %120 = vperm.xlu0 %119, %v34
    %v121 = vpop.permute.xlu0 %120
    %124 = vset.pattern.permute.xlu0 0
    %125 = vperm.xlu0 %124, %v35
    %v126 = vpop.permute.xlu0 %125
    %v128 = vadd.f32 %v104, %v111
    %v129 = vadd.f32 %v105, %v116
    %v130 = vadd.f32 %v106, %v121
    %v131 = vadd.f32 %v107, %v126
    %v132 = vtanh.pop %v128
    %v133 = vtanh.pop %v129
    %v134 = vtanh.pop %v130
    %v135 = vtanh.pop %v131
    %v136 = vld [vmem:[%s2] sm:$0xff]
    %v137 = vld [vmem:[%s2 + $0x8] sm:$0xff]
    %v138 = vld [vmem:[%s2 + $0x10] sm:$0xff]
    %v139 = vld [vmem:[%s2 + $0x18] sm:$0xff]
    %141 = vset.pattern.permute.xlu0 0
    %142 = vperm.xlu0 %141, %v37
    %v143 = vpop.permute.xlu0 %142
    %146 = vset.pattern.permute.xlu0 0
    %147 = vperm.xlu0 %146, %v38
    %v148 = vpop.permute.xlu0 %147
    %151 = vset.pattern.permute.xlu0 0
    %152 = vperm.xlu0 %151, %v39
    %v153 = vpop.permute.xlu0 %152
    %156 = vset.pattern.permute.xlu0 0
    %157 = vperm.xlu0 %156, %v40
    %v158 = vpop.permute.xlu0 %157
    %vm160 = vcmask 261120
    %v162 = vsel %vm160, %v136, 0
    %v165 = vsel %vm160, %v137, 0
    %v168 = vsel %vm160, %v138, 0
    %v171 = vsel %vm160, %v139, 0
    %173 = vmatprep.subr.mxu0 0.0
    %174 = vmatpush1.msra.mxu0 0.0
    %175 = vmatprep.subr.mxu0 0.0
    %176 = vmatpush1.msra.mxu0 0.0
    %177 = vmatprep.subr.mxu0 0.0
    %178 = vmatpush1.msra.mxu0 0.0
    %179 = vmatprep.subr.mxu0 0.0
    %180 = vmatpush1.msra.mxu0 0.0
    %181 = vmatprep.subr.mxu0 0.0
    %182 = vmatpush1.msra.mxu0 0.0
    %183 = vmatprep.subr.mxu0 0.0
    %184 = vmatpush1.msra.mxu0 0.0
    %185 = vmatprep.subr.mxu0 0.0
    %186 = vmatpush1.msra.mxu0 0.0
    %187 = vmatprep.subr.mxu0 0.0
    %188 = vmatpush1.msra.mxu0 0.0
    %189 = vmatprep.subr.mxu0 0.0
    %190 = vmatpush1.msra.mxu0 0.0
    %191 = vmatprep.subr.mxu0 0.0
    %192 = vmatpush1.msra.mxu0 0.0
    %193 = vmatprep.subr.mxu0 0.0
    %194 = vmatpush1.msra.mxu0 0.0
    %195 = vmatprep.subr.mxu0 0.0
    %196 = vmatpush1.msra.mxu0 0.0
    %197 = vmatprep.subr.mxu0 0.0
    %198 = vmatpush1.msra.mxu0 %v135
    %199 = vmatprep.subr.mxu0 0.0
    %200 = vmatpush1.msra.mxu0 %v134
    %201 = vmatprep.subr.mxu0 0.0
    %202 = vmatpush1.msra.mxu0 %v133
    %203 = vmatprep.subr.mxu0 0.0
    %204 = vmatpush1.msra.mxu0 %v132
    %205 = vmatprep.subr.mxu0 0.0
    %206 = vmatpush2.msra.mxu0 0.0
    %207 = vmatprep.subr.mxu0 0.0
    %208 = vmatpush2.msra.mxu0 0.0
    %209 = vmatprep.subr.mxu0 0.0
    %210 = vmatpush2.msra.mxu0 0.0
    %211 = vmatprep.subr.mxu0 0.0
    %212 = vmatpush2.msra.mxu0 0.0
    %213 = vmatprep.subr.mxu0 0.0
    %214 = vmatpush2.msra.mxu0 0.0
    %215 = vmatprep.subr.mxu0 0.0
    %216 = vmatpush2.msra.mxu0 0.0
    %217 = vmatprep.subr.mxu0 0.0
    %218 = vmatpush2.msra.mxu0 0.0
    %219 = vmatprep.subr.mxu0 0.0
    %220 = vmatpush2.msra.mxu0 0.0
    %221 = vmatprep.subr.mxu0 0.0
    %222 = vmatpush2.msra.mxu0 0.0
    %223 = vmatprep.subr.mxu0 0.0
    %224 = vmatpush2.msra.mxu0 0.0
    %225 = vmatprep.subr.mxu0 0.0
    %226 = vmatpush2.msra.mxu0 0.0
    %227 = vmatprep.subr.mxu0 0.0
    %228 = vmatpush2.msra.mxu0 0.0
    %229 = vmatprep.subr.mxu0 0.0
    %230 = vmatpush2.msra.mxu0 0.0
    %231 = vmatprep.subr.mxu0 0.0
    %232 = vmatpush2.msra.mxu0 0.0
    %233 = vmatprep.subr.mxu0 0.0
    %234 = vmatpush2.msra.mxu0 0.0
    %235 = vmatprep.subr.mxu0 0.0
    %236 = vmatpush2.msra.mxu0 0.0
    %237 = vmatprep.mubr.f32.mxu0 0.0
    %238 = vmatmul.mubr.f32.gmra.mxu0 %v162
    %v239 = vpop.f32.mrf.mxu0
    %v240 = vadd.f32 %v143, %v239
    %v241 = vpop.f32.mrf.mxu0
    %242 = vmatprep.mubr.f32.mxu0 0.0
    %243 = vmatmul.mubr.f32.gmra.mxu0 %v165
    %v244 = vpop.f32.mrf.mxu0
    %v245 = vadd.f32 %v148, %v244
    %v246 = vpop.f32.mrf.mxu0
    %247 = vmatprep.mubr.f32.mxu0 0.0
    %248 = vmatmul.mubr.f32.gmra.mxu0 %v168
    %v249 = vpop.f32.mrf.mxu0
    %v250 = vadd.f32 %v153, %v249
    %v251 = vpop.f32.mrf.mxu0
    %252 = vmatprep.mubr.f32.mxu0 0.0
    %253 = vmatmul.mubr.f32.gmra.mxu0 %v171
    %v254 = vpop.f32.mrf.mxu0
    %v255 = vadd.f32 %v158, %v254
    %v256 = vpop.f32.mrf.mxu0
    %257 = vdwg.mxu0
    %v258 = vtanh.pop %v240
    %v259 = vtanh.pop %v245
    %v260 = vtanh.pop %v250
    %v261 = vtanh.pop %v255
    %s262 = scalar_lea.vmem %s2, 32
    %v263 = vld [vmem:[%s262] sm:$0xff]
    %v264 = vld [vmem:[%s262 + $0x8] sm:$0xff]
    %v265 = vld [vmem:[%s262 + $0x10] sm:$0xff]
    %v266 = vld [vmem:[%s262 + $0x18] sm:$0xff]
    %268 = vset.pattern.permute.xlu0 0
    %269 = vperm.xlu0 %268, %v42
    %v270 = vpop.permute.xlu0 %269
    %273 = vset.pattern.permute.xlu0 0
    %274 = vperm.xlu0 %273, %v43
    %v275 = vpop.permute.xlu0 %274
    %278 = vset.pattern.permute.xlu0 0
    %279 = vperm.xlu0 %278, %v44
    %v280 = vpop.permute.xlu0 %279
    %283 = vset.pattern.permute.xlu0 0
    %284 = vperm.xlu0 %283, %v45
    %v285 = vpop.permute.xlu0 %284
    %v288 = vsel %vm160, %v263, 0
    %v291 = vsel %vm160, %v264, 0
    %v294 = vsel %vm160, %v265, 0
    %v297 = vsel %vm160, %v266, 0
    %299 = vmatprep.subr.mxu0 0.0
    %300 = vmatpush1.msra.mxu0 0.0
    %301 = vmatprep.subr.mxu0 0.0
    %302 = vmatpush1.msra.mxu0 0.0
    %303 = vmatprep.subr.mxu0 0.0
    %304 = vmatpush1.msra.mxu0 0.0
    %305 = vmatprep.subr.mxu0 0.0
    %306 = vmatpush1.msra.mxu0 0.0
    %307 = vmatprep.subr.mxu0 0.0
    %308 = vmatpush1.msra.mxu0 0.0
    %309 = vmatprep.subr.mxu0 0.0
    %310 = vmatpush1.msra.mxu0 0.0
    %311 = vmatprep.subr.mxu0 0.0
    %312 = vmatpush1.msra.mxu0 0.0
    %313 = vmatprep.subr.mxu0 0.0
    %314 = vmatpush1.msra.mxu0 0.0
    %315 = vmatprep.subr.mxu0 0.0
    %316 = vmatpush1.msra.mxu0 0.0
    %317 = vmatprep.subr.mxu0 0.0
    %318 = vmatpush1.msra.mxu0 0.0
    %319 = vmatprep.subr.mxu0 0.0
    %320 = vmatpush1.msra.mxu0 0.0
    %321 = vmatprep.subr.mxu0 0.0
    %322 = vmatpush1.msra.mxu0 0.0
    %323 = vmatprep.subr.mxu0 0.0
    %324 = vmatpush1.msra.mxu0 %v261
    %325 = vmatprep.subr.mxu0 0.0
    %326 = vmatpush1.msra.mxu0 %v260
    %327 = vmatprep.subr.mxu0 0.0
    %328 = vmatpush1.msra.mxu0 %v259
    %329 = vmatprep.subr.mxu0 0.0
    %330 = vmatpush1.msra.mxu0 %v258
    %331 = vmatprep.subr.mxu0 0.0
    %332 = vmatpush2.msra.mxu0 0.0
    %333 = vmatprep.subr.mxu0 0.0
    %334 = vmatpush2.msra.mxu0 0.0
    %335 = vmatprep.subr.mxu0 0.0
    %336 = vmatpush2.msra.mxu0 0.0
    %337 = vmatprep.subr.mxu0 0.0
    %338 = vmatpush2.msra.mxu0 0.0
    %339 = vmatprep.subr.mxu0 0.0
    %340 = vmatpush2.msra.mxu0 0.0
    %341 = vmatprep.subr.mxu0 0.0
    %342 = vmatpush2.msra.mxu0 0.0
    %343 = vmatprep.subr.mxu0 0.0
    %344 = vmatpush2.msra.mxu0 0.0
    %345 = vmatprep.subr.mxu0 0.0
    %346 = vmatpush2.msra.mxu0 0.0
    %347 = vmatprep.subr.mxu0 0.0
    %348 = vmatpush2.msra.mxu0 0.0
    %349 = vmatprep.subr.mxu0 0.0
    %350 = vmatpush2.msra.mxu0 0.0
    %351 = vmatprep.subr.mxu0 0.0
    %352 = vmatpush2.msra.mxu0 0.0
    %353 = vmatprep.subr.mxu0 0.0
    %354 = vmatpush2.msra.mxu0 0.0
    %355 = vmatprep.subr.mxu0 0.0
    %356 = vmatpush2.msra.mxu0 0.0
    %357 = vmatprep.subr.mxu0 0.0
    %358 = vmatpush2.msra.mxu0 0.0
    %359 = vmatprep.subr.mxu0 0.0
    %360 = vmatpush2.msra.mxu0 0.0
    %361 = vmatprep.subr.mxu0 0.0
    %362 = vmatpush2.msra.mxu0 0.0
    %363 = vmatprep.mubr.f32.mxu0 0.0
    %364 = vmatmul.mubr.f32.gmra.mxu0 %v288
    %v365 = vpop.f32.mrf.mxu0
    %v366 = vadd.f32 %v270, %v365
    %v367 = vpop.f32.mrf.mxu0
    %368 = vmatprep.mubr.f32.mxu0 0.0
    %369 = vmatmul.mubr.f32.gmra.mxu0 %v291
    %v370 = vpop.f32.mrf.mxu0
    %v371 = vadd.f32 %v275, %v370
    %v372 = vpop.f32.mrf.mxu0
    %373 = vmatprep.mubr.f32.mxu0 0.0
    %374 = vmatmul.mubr.f32.gmra.mxu0 %v294
    %v375 = vpop.f32.mrf.mxu0
    %v376 = vadd.f32 %v280, %v375
    %v377 = vpop.f32.mrf.mxu0
    %378 = vmatprep.mubr.f32.mxu0 0.0
    %379 = vmatmul.mubr.f32.gmra.mxu0 %v297
    %v380 = vpop.f32.mrf.mxu0
    %v381 = vadd.f32 %v285, %v380
    %v382 = vpop.f32.mrf.mxu0
    %383 = vdwg.mxu0
    %v384 = vtanh.pop %v366
    %v385 = vtanh.pop %v371
    %v386 = vtanh.pop %v376
    %v387 = vtanh.pop %v381
    %389 = vset.pattern.permute.xlu0 0
    %390 = vperm.xlu0 %389, %v27
    %v391 = vpop.permute.xlu0 %390
    %394 = vset.pattern.permute.xlu0 0
    %395 = vperm.xlu0 %394, %v28
    %v396 = vpop.permute.xlu0 %395
    %399 = vset.pattern.permute.xlu0 0
    %400 = vperm.xlu0 %399, %v29
    %v401 = vpop.permute.xlu0 %400
    %404 = vset.pattern.permute.xlu0 0
    %405 = vperm.xlu0 %404, %v30
    %v406 = vpop.permute.xlu0 %405
    %v408 = vmul.f32 %v391, %v384
    %v409 = vmul.f32 %v396, %v385
    %v410 = vmul.f32 %v401, %v386
    %v411 = vmul.f32 %v406, %v387
    %v412 = vadd.f32 %v408, %v409
    %v413 = vadd.f32 %v412, %v410
    %v414 = vadd.f32 %v413, %v411
    %v415 = vrot.slane %v414, 4
    %v416 = vadd.f32 %v414, %v415
    %v417 = vrot.slane %v416, 2
    %v418 = vadd.f32 %v416, %v417
    %v419 = vrot.slane %v418, 1
    %v420 = vadd.f32 %v418, %v419
    %422 = vset.pattern.permute.xlu0 0
    %423 = vperm.xlu0 %422, %v47
    %v424 = vpop.permute.xlu0 %423
    %v426 = vadd.f32 %v420, %v424
    %427 = vst [vmem:[#allocation2] sm:$0x1] %v426
    // Predicated region
    $region14: #{tpu_custom_call.1} parent=1 // pred_check
      _
    $region15: #{tpu_custom_call.1} parent=1 // pred_check_branch
      %429 = sbr.rel (0) target = $region17
    $region16: #{tpu_custom_call.1} parent=1 // pred_region
      %s431 = ssub.s32 16, 16
      %432 = vsyncadd [#allocation3], %s431
      %s434 = sshll.u32 [#allocation2], 4
      %s435 = int_to_ptr.vmem [resolvable:$true] %s434
      %437 = dma.vmem_to_hbm [thread:$0]  %s435, 16, %s3, [#allocation3]
    $region17: #{tpu_custom_call.1} parent=1 // pred_fallthru
      _
    // Predicated region
    $region18: #{tpu_custom_call.1} parent=1 // pred_check
      _
    $region19: #{tpu_custom_call.1} parent=1 // pred_check_branch
      %439 = sbr.rel (0) target = $region21
    $region20: #{tpu_custom_call.1} parent=1 // pred_region
      %440 = dma.done [#allocation3], 16
    $region21: #{tpu_custom_call.1} parent=1 // pred_fallthru
      _
    %441 = vsyncpa [#allocation3], 1

</llo_original>
